<compile_context>
chip_gen: v7x
topology: tpu7x:2x2x1
jax: 0.10.0
libtpu: 0.0.40
codegen_flags: <defaults>
</compile_context>

<pallas_src>
import functools

import jax
import jax.numpy as jnp
from jax.experimental import pallas as pl
from jax.experimental.pallas import tpu as pltpu


def _round_up(v, m):
    return ((v + m - 1) // m) * m


# ---------------------------------------------------------------------------
# Tiny path: out_features == 1, in_features <= 8  (the TestModel case)
# ---------------------------------------------------------------------------
def _linear_vpu_kernel(w_ref, b_ref, x_ref, o_ref):
    # w_ref: SMEM (K,) f32 ; b_ref: SMEM (1,) f32 ; x_ref: VMEM (tb, K) ; o_ref: VMEM (tb, 1)
    x = x_ref[...]
    acc = jnp.zeros(o_ref.shape, jnp.float32) + b_ref[0]          # bias broadcast (VPU)
    for k in range(x.shape[1]):                                    # unrolled at trace time (K tiny)
        acc = acc + x[:, k:k + 1].astype(jnp.float32) * w_ref[k]
    # NOTE: (tb, 1) output is lane-sparse; negligible at this N.  For very large B a
    # lane-dense (1, tb) layout would be preferable (perf-review item), not needed here.
    o_ref[...] = acc.astype(o_ref.dtype)


def _linear_small(x, wt, b, *, tile_b=2048):
    B, in_f = x.shape
    out_f = wt.shape[1]
    w_flat = wt.reshape(-1).astype(jnp.float32)                    # (K,)  -> SMEM scalars
    b_vec = b.reshape(-1).astype(jnp.float32)                      # (1,)  -> SMEM scalar
    tb = B if B <= tile_b else tile_b                              # row tile (full-dim block if small)
    grid = (pl.cdiv(B, tb),)
    return pl.pallas_call(
        _linear_vpu_kernel,
        grid=grid,
        out_shape=jax.ShapeDtypeStruct((B, out_f), x.dtype),
        in_specs=[
            pl.BlockSpec(memory_space=pltpu.MemorySpace.SMEM),     # weights as scalars
            pl.BlockSpec(memory_space=pltpu.MemorySpace.SMEM),     # bias as scalar
            pl.BlockSpec((tb, in_f), lambda i: (i, 0)),
        ],
        out_specs=pl.BlockSpec((tb, out_f), lambda i: (i, 0)),
        compiler_params=pltpu.CompilerParams(dimension_semantics=("parallel",)),
    )(w_flat, b_vec, x)


# ---------------------------------------------------------------------------
# Scalable path: tiled MXU matmul, weight already transposed to (K, N)
# ---------------------------------------------------------------------------
def _mxu_kernel_f32_out(x_ref, wt_ref, b_ref, o_ref):
    # f32 output: accumulate directly into the VMEM-resident output block
    # (no scratch accumulator, no epilogue copy); bias folded into the init.
    k = pl.program_id(2)

    @pl.when(k == 0)
    def _():
        o_ref[...] = jnp.zeros(o_ref.shape, jnp.float32) + b_ref[...]

    o_ref[...] += jnp.dot(x_ref[...], wt_ref[...], preferred_element_type=jnp.float32)


def _mxu_kernel_acc(x_ref, wt_ref, b_ref, o_ref, acc_ref):
    # Low-precision output: keep an f32 scratch accumulator, single cast at the end.
    k = pl.program_id(2)

    @pl.when(k == 0)
    def _():
        acc_ref[...] = jnp.zeros(acc_ref.shape, jnp.float32) + b_ref[...]

    acc_ref[...] += jnp.dot(x_ref[...], wt_ref[...], preferred_element_type=jnp.float32)

    @pl.when(k == pl.num_programs(2) - 1)
    def _():
        o_ref[...] = acc_ref[...].astype(o_ref.dtype)


def _pick_tile(dim, pref, granule):
    """Largest tile <= pref that is a multiple of `granule` and divides `dim`
    (pad-free common path).  Small ragged dims use a full-dim block; padding is
    a last resort for large dims that are not a granule multiple."""
    if dim % granule == 0:
        t = min(pref, dim)
        while dim % t:
            t -= granule
        return t, dim
    if dim <= pref:                    # full-dim block is always legal
        return dim, dim
    padded = _round_up(dim, granule)
    t = min(pref, padded)
    while padded % t:
        t -= granule
    return t, padded


def _linear_tiled(x, wt, b, *, tm=512, tn=512, tk=512, use_bf16_inputs=False):
    M, K = x.shape
    K2, N = wt.shape
    assert K == K2, "weight must be pre-transposed to (in_features, out_features)"

    tm, Mp = _pick_tile(M, tm, 8)
    tn, Np = _pick_tile(N, tn, 128)
    tk, Kp = _pick_tile(K, tk, 128)

    # v7x megacore: ensure >= 2 "parallel" grid points so both TensorCores get work.
    if (Mp // tm) * (Np // tn) < 2:
        if tn % 256 == 0 and Np % (tn // 2) == 0:
            tn //= 2
        elif tm % 16 == 0 and Mp % (tm // 2) == 0:
            tm //= 2

    in_dt = jnp.bfloat16 if use_bf16_inputs else x.dtype          # precision tradeoff, off by default
    xp = x.astype(in_dt)
    wtp = wt.astype(in_dt)
    bp = b.astype(jnp.float32).reshape(1, N)
    # Padding only happens for dims that are large AND not hardware-granule multiples.
    if (Mp, Kp) != (M, K):
        xp = jnp.pad(xp, ((0, Mp - M), (0, Kp - K)))
    if (Kp, Np) != (K, N):
        wtp = jnp.pad(wtp, ((0, Kp - K), (0, Np - N)))
    if Np != N:
        bp = jnp.pad(bp, ((0, 0), (0, Np - N)))

    grid = (Mp // tm, Np // tn, Kp // tk)
    out_dtype = x.dtype
    f32_out = out_dtype == jnp.float32
    kernel = _mxu_kernel_f32_out if f32_out else _mxu_kernel_acc
    scratch = [] if f32_out else [pltpu.VMEM((tm, tn), jnp.float32)]

    out = pl.pallas_call(
        kernel,
        out_shape=jax.ShapeDtypeStruct((Mp, Np), out_dtype),
        grid_spec=pltpu.PrefetchScalarGridSpec(
            num_scalar_prefetch=0,
            grid=grid,
            in_specs=[
                pl.BlockSpec((tm, tk), lambda i, j, k: (i, k)),
                pl.BlockSpec((tk, tn), lambda i, j, k: (k, j)),
                pl.BlockSpec((1, tn), lambda i, j, k: (0, j)),
            ],
            out_specs=pl.BlockSpec((tm, tn), lambda i, j, k: (i, j)),
            scratch_shapes=scratch,
        ),
        compiler_params=pltpu.CompilerParams(
            dimension_semantics=("parallel", "parallel", "arbitrary"),
            # 512-class f32 tiles double-buffered are ~7-11 MiB: 32 MiB explicitly
            # raises v5e's 16 MiB scoped default and stays well inside v7x's
            # 64 MiB physical VMEM per TensorCore.
            vmem_limit_bytes=32 * 1024 * 1024,
        ),
    )(xp, wtp, bp)
    if (Mp, Np) != (M, N):
        out = out[:M, :N]
    return out


# ---------------------------------------------------------------------------
# Public wrapper: nn.Linear semantics, weight passed PRE-TRANSPOSED as (K, N)
# ---------------------------------------------------------------------------
@functools.partial(jax.jit, static_argnames=("use_bf16_inputs",))
def linear_forward(x, wt, b, use_bf16_inputs=False):
    """y = x @ wt + b, with wt = W^T of shape (in_features, out_features)."""
    K, N = wt.shape
    if N == 1 and K <= 8:
        # TestModel case (Linear(2, 1)): MXU would waste the systolic array; use the
        # VPU/SMEM path (row-tiled, so any batch size is VMEM-safe).
        return _linear_small(x, wt, b)
    return _linear_tiled(x, wt, b, use_bf16_inputs=use_bf16_inputs)


class TestModelPallas:
    """Pallas equivalent of TestModel; weight transposed ONCE at parameter load."""

    def __init__(self, w, b):
        self.wt = jnp.asarray(w).T           # (in_features, out_features) — hoisted transpose
        self.b = jnp.asarray(b)

    def __call__(self, x):
        return linear_forward(x, self.wt, self.b)


if __name__ == "__main__":
    key = jax.random.PRNGKey(0)
    kx, kw, kb, kx2, kw2, kb2 = jax.random.split(key, 6)

    # --- TestModel: nn.Linear(2, 1), small batch ---
    in_features, out_features, batch = 2, 1, 8
    x = jax.random.normal(kx, (batch, in_features), dtype=jnp.float32)
    bound = 1.0 / (in_features ** 0.5)
    w = jax.random.uniform(kw, (out_features, in_features), jnp.float32, -bound, bound)
    b = jax.random.uniform(kb, (out_features,), jnp.float32, -bound, bound)

    model = TestModelPallas(w, b)
    y = model(x)
    jax.block_until_ready(y)
    y_ref = x @ w.T + b
    assert y.shape == (batch, out_features)
    assert jnp.allclose(y, y_ref, atol=1e-5), "tiny VPU path mismatch vs reference"

    # --- sanity-check the scalable tiled MXU path (pad-free tiles, K-accumulation) ---
    M, K, N = 256, 768, 512
    x2 = jax.random.normal(kx2, (M, K), dtype=jnp.float32)
    w2 = jax.random.normal(kw2, (N, K), dtype=jnp.float32) * 0.02
    b2 = jax.random.normal(kb2, (N,), dtype=jnp.float32)
    wt2 = jnp.asarray(w2).T                      # transpose hoisted out of the call path
    y2 = linear_forward(x2, wt2, b2)
    jax.block_until_ready(y2)
    y2_ref = x2 @ w2.T + b2
    assert jnp.allclose(y2, y2_ref, atol=2e-2, rtol=2e-2), "tiled MXU path mismatch vs reference"

    print("KERNEL_OK")
</pallas_src>

<mosaic_0001>
module attributes {stable_mosaic.version = 11 : i64} {
  func.func @_linear_vpu_kernel(%arg0: i32, %arg1: memref<2xf32, #tpu.memory_space<smem>>, %arg2: memref<1xf32, #tpu.memory_space<smem>>, %arg3: memref<8x2xf32, #tpu.memory_space<vmem>>, %arg4: memref<8x1xf32, #tpu.memory_space<vmem>>) attributes {dimension_semantics = [#tpu.dimension_semantics<parallel>], iteration_bounds = array<i64: 1>, scalar_prefetch = 0 : i64, scratch_operands = 0 : i64, tpu.core_type = #tpu.core_type<tc>, window_params = [{transform_indices = @transform_0, window_bounds = array<i64: 2>}, {transform_indices = @transform_1, window_bounds = array<i64: 1>}, {transform_indices = @transform_2, window_bounds = array<i64: 8, 2>}, {transform_indices = @transform_3, window_bounds = array<i64: 8, 1>}]} {
    %c0 = arith.constant 0 : index
    %c0_0 = arith.constant 0 : index
    %0 = vector.load %arg3[%c0, %c0_0] : memref<8x2xf32, #tpu.memory_space<vmem>>, vector<8x2xf32>
    %cst = arith.constant 0.000000e+00 : f32
    %1 = vector.broadcast %cst : f32 to vector<8x1xf32>
    %c0_1 = arith.constant 0 : index
    %2 = memref.load %arg2[%c0_1] : memref<1xf32, #tpu.memory_space<smem>>
    %3 = vector.broadcast %2 : f32 to vector<8x1xf32>
    %4 = arith.addf %1, %3 : vector<8x1xf32>
    %5 = vector.extract_strided_slice %0 {offsets = [0, 0], sizes = [8, 1], strides = [1, 1]} : vector<8x2xf32> to vector<8x1xf32>
    %c0_2 = arith.constant 0 : index
    %6 = memref.load %arg1[%c0_2] : memref<2xf32, #tpu.memory_space<smem>>
    %7 = vector.broadcast %6 : f32 to vector<8x1xf32>
    %8 = arith.mulf %5, %7 : vector<8x1xf32>
    %9 = arith.addf %4, %8 : vector<8x1xf32>
    %10 = vector.extract_strided_slice %0 {offsets = [0, 1], sizes = [8, 1], strides = [1, 1]} : vector<8x2xf32> to vector<8x1xf32>
    %c1 = arith.constant 1 : index
    %11 = memref.load %arg1[%c1] : memref<2xf32, #tpu.memory_space<smem>>
    %12 = vector.broadcast %11 : f32 to vector<8x1xf32>
    %13 = arith.mulf %10, %12 : vector<8x1xf32>
    %14 = arith.addf %9, %13 : vector<8x1xf32>
    %c0_3 = arith.constant 0 : index
    %c0_4 = arith.constant 0 : index
    %15 = vector.load %arg4[%c0_3, %c0_4] : memref<8x1xf32, #tpu.memory_space<vmem>>, vector<8x1xf32>
    tpu.vector_store %arg4[%c0_3, %c0_4], %14 {strides = array<i32>} : memref<8x1xf32, #tpu.memory_space<vmem>>, vector<8x1xf32>,
    return
  }
  func.func @transform_0(%arg0: i32) -> i32 {
    %c0_i32 = arith.constant 0 : i32
    %c0_i32_0 = arith.constant 0 : i32
    return %c0_i32 : i32
  }
  func.func @transform_1(%arg0: i32) -> i32 {
    %c0_i32 = arith.constant 0 : i32
    %c0_i32_0 = arith.constant 0 : i32
    return %c0_i32 : i32
  }
  func.func @transform_2(%arg0: i32) -> (i32, i32) {
    %c0_i32 = arith.constant 0 : i32
    %c0_i32_0 = arith.constant 0 : i32
    return %arg0, %c0_i32 : i32, i32
  }
  func.func @transform_3(%arg0: i32) -> (i32, i32) {
    %c0_i32 = arith.constant 0 : i32
    %c0_i32_0 = arith.constant 0 : i32
    return %arg0, %c0_i32 : i32, i32
  }
}

</mosaic_0001>

<llo_original>
// kernel: linear_forward.1
$region0: #{linear_forward.1}
  #allocation0 [shape = 'u32[]', space=smem, size = 0x4, offset = 0x4, fixed_abs, tag = 'smem constant byte address 0x4 - core index']
  #allocation1 [shape = 'u32[144,128]{1,0:T(1,128)}', space=vmem, size = 0x12000, scoped, tag = 'internal scratch']
  #allocation2 [shape = 'f32[1]{0:T(128)S(6)}', space=smem, size = 0x200, scoped, tag = 'scoped memory for linear_forward.1']
  %s0 = inlined_call_operand.vmem [shape: f32[2], index: 0, kind: input, shape index: {}]
  %s1 = inlined_call_operand.<no memory space> [shape: f32[1], index: 1, kind: input, shape index: {}]
  %s2 = inlined_call_operand.vmem [shape: f32[8,2], index: 2, kind: input, shape index: {}]
  %s3 = inlined_call_operand.vmem [shape: f32[8,1], index: 3, kind: output, shape index: {}]
  %s4 = sld [smem:[#allocation0]]
  $region26: #{linear_forward.1} parent=0
    _
  %s6 = ssub.s32 1, %s4
  %s7 = scalar_select 0, %s6, %s4
  %8 = sst [smem:[#allocation2]] %s1
  $region1: #{linear_forward.1} parent=0
    #allocation3 [shape = 'u8[512]{0}', space=smem, size = 0x200, scoped, tag = 'input window, operand 0, single buffered']
    #allocation4 [shape = 's32[1]{0}', space=sflag, size = 0x4, scoped, tag = 'scoped memory for linear_forward.1']
    %9 = vsyncpa [#allocation4], 0
    // Predicated region
    $region2: #{linear_forward.1} parent=1 // pred_check
      _
    $region3: #{linear_forward.1} parent=1 // pred_check_branch
      %11 = sbr.rel (0) target = $region5
    $region4: #{linear_forward.1} parent=1 // pred_region
      %s13 = ssub.s32 16, 16
      %14 = vsyncadd [#allocation4], %s13
      %s16 = sshll.u32 %s0, 4
      %s17 = int_to_ptr.vmem [resolvable:$true] %s16
      %19 = dma.vmem_to_smem %s17, 16, [#allocation3], [#allocation4]
    $region5: #{linear_forward.1} parent=1 // pred_fallthru
      _
    // Predicated region
    $region6: #{linear_forward.1} parent=1 // pred_check
      _
    $region7: #{linear_forward.1} parent=1 // pred_check_branch
      %21 = sbr.rel (0) target = $region9
    $region8: #{linear_forward.1} parent=1 // pred_region
      _
    $region9: #{linear_forward.1} parent=1 // pred_fallthru
      _
    // Predicated region
    $region10: #{linear_forward.1} parent=1 // pred_check
      _
    $region11: #{linear_forward.1} parent=1 // pred_check_branch
      %23 = sbr.rel (0) target = $region13
    $region12: #{linear_forward.1} parent=1 // pred_region
      _
    $region13: #{linear_forward.1} parent=1 // pred_fallthru
      _
    // Predicated region
    $region14: #{linear_forward.1} parent=1 // pred_check
      _
    $region15: #{linear_forward.1} parent=1 // pred_check_branch
      %25 = sbr.rel (0) target = $region17
    $region16: #{linear_forward.1} parent=1 // pred_region
      %26 = dma.done [#allocation4], 16
    $region17: #{linear_forward.1} parent=1 // pred_fallthru
      _
    %27 = sfence
    %v28 = vld [vmem:[%s2] sm:$0xff]
    %s29 = sld [smem:[#allocation2]]
    %v30 = vstv %s29
    %v31 = vadd.f32 %v30, 0.0
    %s32 = sld [smem:[#allocation3]]
    %v33 = vstv %s32
    %v34 = vmul.f32 %v28, %v33
    %v35 = vadd.f32 %v31, %v34
    %s36 = sld [smem:[#allocation3 + $0x1]]
    %v37 = vstv %s36
    %v38 = vmul.f32 %v28, %v37
    %40 = vrot.lane.b32.xlu0 %v38, 127
    %v41 = vpop.permute.xlu0 %40
    %v43 = vadd.f32 %v35, %v41
    %vm44 = vcmask 7168
    %45 = vst.msk [vmem:[%s3] sm:$0xff] %vm44, %v43
    // Predicated region
    $region18: #{linear_forward.1} parent=1 // pred_check
      _
    $region19: #{linear_forward.1} parent=1 // pred_check_branch
      %47 = sbr.rel (0) target = $region21
    $region20: #{linear_forward.1} parent=1 // pred_region
      _
    $region21: #{linear_forward.1} parent=1 // pred_fallthru
      _
    // Predicated region
    $region22: #{linear_forward.1} parent=1 // pred_check
      _
    $region23: #{linear_forward.1} parent=1 // pred_check_branch
      %49 = sbr.rel (0) target = $region25
    $region24: #{linear_forward.1} parent=1 // pred_region
      _
    $region25: #{linear_forward.1} parent=1 // pred_fallthru
      _
    %50 = vsyncpa [#allocation4], 1

</llo_original>
